<compile_context>
chip_gen: v6e
topology: v6e:2x2x1
jax: 0.10.0
libtpu: 0.0.40
codegen_flags: <defaults>
</compile_context>

<pallas_src>
import functools

import jax
import jax.numpy as jnp
from jax.experimental import pallas as pl
from jax.experimental.pallas import tpu as pltpu

NORM_EPS = 1e-6  # matches `norm + 1e-06` in the PyTorch cosine_sim


def _contrastive_kernel(img_i_ref, cap_i_ref, img_j_ref, cap_j_ref,
                        row_ref, col_ref, *, margin, max_violation, tm, tn):
    """One (tm, tn) tile of S; reduces img2cap over columns and cap2img over rows."""
    i = pl.program_id(0)
    j = pl.program_id(1)

    @pl.when(j == 0)
    def _():  # per-row accumulator (resident across the inner j axis)
        row_ref[...] = jnp.zeros_like(row_ref)

    @pl.when((i == 0) & (j == 0))
    def _():  # per-column accumulator (resident across the whole grid)
        col_ref[...] = jnp.zeros_like(col_ref)

    def _normalize(v):
        # F.normalize-like, with the module's additive eps: v / (||v|| + 1e-6).
        v = v.astype(jnp.float32)
        n = jnp.sqrt(jnp.sum(v * v, axis=-1, keepdims=True))
        return v * (1.0 / (n + NORM_EPS))

    img_i = _normalize(img_i_ref[...])   # (tm, D) image rows at row block
    cap_i = _normalize(cap_i_ref[...])   # (tm, D) caption rows at row block
    img_j = _normalize(img_j_ref[...])   # (tn, D) image rows at column block
    cap_j = _normalize(cap_j_ref[...])   # (tn, D) caption rows at column block

    # Positives: S[k,k] = cos(images[k], captions[k]) from resident blocks.
    pos_i = jnp.sum(img_i * cap_i, axis=-1, keepdims=True)   # (tm, 1)
    pos_j = jnp.sum(img_j * cap_j, axis=-1)[None, :]         # (1, tn)

    # NT matmul on the MXU: contract last dims, bf16 operands, f32 accumulate.
    s = jax.lax.dot_general(
        img_i.astype(jnp.bfloat16), cap_j.astype(jnp.bfloat16),
        dimension_numbers=(((1,), (1,)), ((), ())),
        preferred_element_type=jnp.float32)                  # (tm, tn)

    # Zero the global diagonal (masked_fill_ with eye in the reference).
    row_g = i * tm + jax.lax.broadcasted_iota(jnp.int32, (tm, tn), 0)
    col_g = j * tn + jax.lax.broadcasted_iota(jnp.int32, (tm, tn), 1)
    off_diag = row_g != col_g

    # img2cap[i,j] = relu(margin + S - S[j,j]) ; cap2img[i,j] = relu(margin + S - S[i,i])
    hinge_i2c = jnp.where(off_diag, jnp.maximum(margin + s - pos_j, 0.0), 0.0)
    hinge_c2i = jnp.where(off_diag, jnp.maximum(margin + s - pos_i, 0.0), 0.0)

    if max_violation:
        # hinge >= 0 and diag is zeroed, so zero-init max matches torch exactly.
        row_ref[...] = jnp.maximum(row_ref[...],
                                   jnp.max(hinge_i2c, axis=-1, keepdims=True))
        col_new = jnp.max(hinge_c2i, axis=0, keepdims=True)   # (1, tn)
    else:
        row_ref[...] += jnp.sum(hinge_i2c, axis=-1, keepdims=True)
        col_new = jnp.sum(hinge_c2i, axis=0, keepdims=True)

    # Scatter this tile's column reduction into row j of the resident column
    # accumulator with a one-hot row mask (avoids dynamic-index stores; O(B) work).
    n_jb = col_ref.shape[0]
    row_sel = jax.lax.broadcasted_iota(jnp.int32, (n_jb, tn), 0) == j
    update = jnp.where(row_sel, col_new, 0.0)                 # (n_jb, tn)
    if max_violation:
        col_ref[...] = jnp.maximum(col_ref[...], update)
    else:
        col_ref[...] += update


def _vmem_estimate(tm, tn, dim, batch):
    inputs = 2 * 2 * (tm + tn) * dim * 4    # double-buffered f32 input blocks (4 streams)
    norms = 2 * (tm + tn) * dim * 4         # normalized f32 copies
    bf16s = (tm + tn) * dim * 2             # MXU operand casts
    tiles = 6 * tm * tn * 4                 # s / hinge / mask temporaries
    outs = 2 * (batch + tm) * 4             # tiny output blocks
    return inputs + norms + bf16s + tiles + outs


def _pick_tiles(batch, dim, budget=28 << 20):
    cands = [t for t in (512, 256, 128, 64, 32, 16, 8) if batch % t == 0]
    if not cands:
        return batch, batch  # tiny / odd batch: single tile (block == full array is legal)
    for tm in cands:                      # large row tile first: fewer column-stream refetches
        for tn in cands:
            if tn > 256:
                continue
            if _vmem_estimate(tm, tn, dim, batch) <= budget:
                return tm, tn
    t = cands[-1]
    return t, t


def contrastive_loss(images, captions, *, margin=0.2, max_violation=True):
    """images, captions: (batch, embed_dim) float32 -> scalar float32 loss."""
    assert images.shape == captions.shape and images.ndim == 2
    batch, dim = images.shape
    tm, tn = _pick_tiles(batch, dim)
    n_ib, n_jb = batch // tm, batch // tn

    kernel = functools.partial(_contrastive_kernel, margin=float(margin),
                               max_violation=bool(max_violation), tm=tm, tn=tn)

    est = _vmem_estimate(tm, tn, dim, batch)
    vmem_limit = min(56 << 20, max(16 << 20, int(est * 1.5)))

    row, col = pl.pallas_call(
        kernel,
        out_shape=(jax.ShapeDtypeStruct((batch, 1), jnp.float32),     # per-row img2cap
                   jax.ShapeDtypeStruct((n_jb, tn), jnp.float32)),    # per-col cap2img
        grid=(n_ib, n_jb),
        in_specs=[
            pl.BlockSpec((tm, dim), lambda i, j: (i, 0)),   # images  @ row block
            pl.BlockSpec((tm, dim), lambda i, j: (i, 0)),   # captions@ row block
            pl.BlockSpec((tn, dim), lambda i, j: (j, 0)),   # images  @ col block
            pl.BlockSpec((tn, dim), lambda i, j: (j, 0)),   # captions@ col block
        ],
        out_specs=(
            pl.BlockSpec((tm, 1), lambda i, j: (i, 0)),     # accumulator over j
            pl.BlockSpec((n_jb, tn), lambda i, j: (0, 0)),  # resident over whole grid
        ),
        compiler_params=pltpu.CompilerParams(
            # Both outputs reduce over one grid axis each -> neither axis is parallel.
            dimension_semantics=("arbitrary", "arbitrary"),
            vmem_limit_bytes=vmem_limit,
        ),
    )(images, captions, images, captions)

    col_flat = col.reshape(-1)
    if max_violation:
        return jnp.mean(row) + jnp.mean(col_flat)
    denom = jnp.float32(batch) * jnp.float32(batch)
    return jnp.sum(row) / denom + jnp.sum(col_flat) / denom


def _reference(images, captions, margin, max_violation):
    """Plain-JAX reference mirroring the PyTorch module exactly (f32 throughout)."""
    img_n = images / (jnp.linalg.norm(images, axis=1, keepdims=True) + NORM_EPS)
    cap_n = captions / (jnp.linalg.norm(captions, axis=1, keepdims=True) + NORM_EPS)
    s = img_n @ cap_n.T
    pos = jnp.diag(s)[:, None]
    loss_cap2img = jnp.maximum(margin + s - pos, 0.0)     # positive_image  (row positive)
    loss_img2cap = jnp.maximum(margin + s - pos.T, 0.0)   # positive_caption (col positive)
    eye = jnp.eye(s.shape[0], dtype=bool)
    loss_cap2img = jnp.where(eye, 0.0, loss_cap2img)
    loss_img2cap = jnp.where(eye, 0.0, loss_img2cap)
    if max_violation:
        loss_img2cap = jnp.max(loss_img2cap, axis=1)
        loss_cap2img = jnp.max(loss_cap2img, axis=0)
    return jnp.mean(loss_img2cap) + jnp.mean(loss_cap2img)


if __name__ == "__main__":
    key = jax.random.PRNGKey(0)
    k1, k2 = jax.random.split(key)
    batch, embed_dim = 8, 32
    images = jax.random.normal(k1, (batch, embed_dim), dtype=jnp.float32)
    captions = jax.random.normal(k2, (batch, embed_dim), dtype=jnp.float32)

    margin = 0.2
    for mv in (True, False):
        loss = jax.block_until_ready(
            contrastive_loss(images, captions, margin=margin, max_violation=mv))
        ref = jax.block_until_ready(_reference(images, captions, margin, mv))
        assert jnp.isfinite(loss), "non-finite loss"
        # bf16 MXU operands => ~1e-3-level deviation from the f32 reference.
        assert abs(float(loss) - float(ref)) < 1e-2, (mv, float(loss), float(ref))
    print("KERNEL_OK")
</pallas_src>

<mosaic_0001>
module attributes {stable_mosaic.version = 11 : i64} {
  func.func @_contrastive_kernel(%arg0: i32, %arg1: i32, %arg2: memref<8x32xf32, #tpu.memory_space<vmem>>, %arg3: memref<8x32xf32, #tpu.memory_space<vmem>>, %arg4: memref<8x32xf32, #tpu.memory_space<vmem>>, %arg5: memref<8x32xf32, #tpu.memory_space<vmem>>, %arg6: memref<8x1xf32, #tpu.memory_space<vmem>>, %arg7: memref<1x8xf32, #tpu.memory_space<vmem>>) attributes {dimension_semantics = [#tpu.dimension_semantics<arbitrary>, #tpu.dimension_semantics<arbitrary>], iteration_bounds = array<i64: 1, 1>, scalar_prefetch = 0 : i64, scratch_operands = 0 : i64, tpu.core_type = #tpu.core_type<tc>, window_params = [{transform_indices = @transform_0, window_bounds = array<i64: 8, 32>}, {transform_indices = @transform_1, window_bounds = array<i64: 8, 32>}, {transform_indices = @transform_2, window_bounds = array<i64: 8, 32>}, {transform_indices = @transform_3, window_bounds = array<i64: 8, 32>}, {transform_indices = @transform_4, window_bounds = array<i64: 8, 1>}, {pipeline_mode = #tpu.pipeline_mode<synchronous>, transform_indices = @transform_5, window_bounds = array<i64: 1, 8>}]} {
    %c0_i32 = arith.constant 0 : i32
    %0 = arith.cmpi eq, %arg1, %c0_i32 : i32
    %1 = arith.extui %0 : i1 to i32
    %c0_i32_0 = arith.constant 0 : i32
    %2 = arith.cmpi ne, %1, %c0_i32_0 : i32
    scf.if %2 {
      %cst_43 = arith.constant 0.000000e+00 : f32
      %101 = vector.broadcast %cst_43 : f32 to vector<8x1xf32>
      %c0_44 = arith.constant 0 : index
      %c0_45 = arith.constant 0 : index
      %102 = vector.load %arg6[%c0_44, %c0_45] : memref<8x1xf32, #tpu.memory_space<vmem>>, vector<8x1xf32>
      tpu.vector_store %arg6[%c0_44, %c0_45], %101 {strides = array<i32>} : memref<8x1xf32, #tpu.memory_space<vmem>>, vector<8x1xf32>,
    } else {
    }
    %c0_i32_1 = arith.constant 0 : i32
    %3 = arith.cmpi eq, %arg0, %c0_i32_1 : i32
    %c0_i32_2 = arith.constant 0 : i32
    %4 = arith.cmpi eq, %arg1, %c0_i32_2 : i32
    %5 = arith.andi %3, %4 : i1
    %6 = arith.extui %5 : i1 to i32
    %c0_i32_3 = arith.constant 0 : i32
    %7 = arith.cmpi ne, %6, %c0_i32_3 : i32
    scf.if %7 {
      %cst_43 = arith.constant 0.000000e+00 : f32
      %101 = vector.broadcast %cst_43 : f32 to vector<1x8xf32>
      %c0_44 = arith.constant 0 : index
      %c0_45 = arith.constant 0 : index
      %102 = vector.load %arg7[%c0_44, %c0_45] : memref<1x8xf32, #tpu.memory_space<vmem>>, vector<1x8xf32>
      tpu.vector_store %arg7[%c0_44, %c0_45], %101 {strides = array<i32>} : memref<1x8xf32, #tpu.memory_space<vmem>>, vector<1x8xf32>,
    } else {
    }
    %c0 = arith.constant 0 : index
    %c0_4 = arith.constant 0 : index
    %8 = vector.load %arg2[%c0, %c0_4] : memref<8x32xf32, #tpu.memory_space<vmem>>, vector<8x32xf32>
    %9 = arith.mulf %8, %8 : vector<8x32xf32>
    %cst = arith.constant dense<0.000000e+00> : vector<8xf32>
    %10 = vector.multi_reduction <add>, %9, %cst [1] : vector<8x32xf32> to vector<8xf32>
    %11 = vector.shape_cast %10 : vector<8xf32> to vector<8x1xf32>
    %12 = math.sqrt %11 : vector<8x1xf32>
    %cst_5 = arith.constant 9.99999997E-7 : f32
    %13 = vector.broadcast %cst_5 : f32 to vector<8x1xf32>
    %14 = arith.addf %12, %13 : vector<8x1xf32>
    %cst_6 = arith.constant 1.000000e+00 : f32
    %15 = vector.broadcast %cst_6 : f32 to vector<8x1xf32>
    %16 = arith.divf %15, %14 : vector<8x1xf32>
    %17 = vector.broadcast %16 : vector<8x1xf32> to vector<8x32xf32>
    %18 = arith.mulf %8, %17 : vector<8x32xf32>
    %c0_7 = arith.constant 0 : index
    %c0_8 = arith.constant 0 : index
    %19 = vector.load %arg3[%c0_7, %c0_8] : memref<8x32xf32, #tpu.memory_space<vmem>>, vector<8x32xf32>
    %20 = arith.mulf %19, %19 : vector<8x32xf32>
    %cst_9 = arith.constant dense<0.000000e+00> : vector<8xf32>
    %21 = vector.multi_reduction <add>, %20, %cst_9 [1] : vector<8x32xf32> to vector<8xf32>
    %22 = vector.shape_cast %21 : vector<8xf32> to vector<8x1xf32>
    %23 = math.sqrt %22 : vector<8x1xf32>
    %cst_10 = arith.constant 9.99999997E-7 : f32
    %24 = vector.broadcast %cst_10 : f32 to vector<8x1xf32>
    %25 = arith.addf %23, %24 : vector<8x1xf32>
    %cst_11 = arith.constant 1.000000e+00 : f32
    %26 = vector.broadcast %cst_11 : f32 to vector<8x1xf32>
    %27 = arith.divf %26, %25 : vector<8x1xf32>
    %28 = vector.broadcast %27 : vector<8x1xf32> to vector<8x32xf32>
    %29 = arith.mulf %19, %28 : vector<8x32xf32>
    %c0_12 = arith.constant 0 : index
    %c0_13 = arith.constant 0 : index
    %30 = vector.load %arg4[%c0_12, %c0_13] : memref<8x32xf32, #tpu.memory_space<vmem>>, vector<8x32xf32>
    %31 = arith.mulf %30, %30 : vector<8x32xf32>
    %cst_14 = arith.constant dense<0.000000e+00> : vector<8xf32>
    %32 = vector.multi_reduction <add>, %31, %cst_14 [1] : vector<8x32xf32> to vector<8xf32>
    %33 = vector.shape_cast %32 : vector<8xf32> to vector<8x1xf32>
    %34 = math.sqrt %33 : vector<8x1xf32>
    %cst_15 = arith.constant 9.99999997E-7 : f32
    %35 = vector.broadcast %cst_15 : f32 to vector<8x1xf32>
    %36 = arith.addf %34, %35 : vector<8x1xf32>
    %cst_16 = arith.constant 1.000000e+00 : f32
    %37 = vector.broadcast %cst_16 : f32 to vector<8x1xf32>
    %38 = arith.divf %37, %36 : vector<8x1xf32>
    %39 = vector.broadcast %38 : vector<8x1xf32> to vector<8x32xf32>
    %40 = arith.mulf %30, %39 : vector<8x32xf32>
    %c0_17 = arith.constant 0 : index
    %c0_18 = arith.constant 0 : index
    %41 = vector.load %arg5[%c0_17, %c0_18] : memref<8x32xf32, #tpu.memory_space<vmem>>, vector<8x32xf32>
    %42 = arith.mulf %41, %41 : vector<8x32xf32>
    %cst_19 = arith.constant dense<0.000000e+00> : vector<8xf32>
    %43 = vector.multi_reduction <add>, %42, %cst_19 [1] : vector<8x32xf32> to vector<8xf32>
    %44 = vector.shape_cast %43 : vector<8xf32> to vector<8x1xf32>
    %45 = math.sqrt %44 : vector<8x1xf32>
    %cst_20 = arith.constant 9.99999997E-7 : f32
    %46 = vector.broadcast %cst_20 : f32 to vector<8x1xf32>
    %47 = arith.addf %45, %46 : vector<8x1xf32>
    %cst_21 = arith.constant 1.000000e+00 : f32
    %48 = vector.broadcast %cst_21 : f32 to vector<8x1xf32>
    %49 = arith.divf %48, %47 : vector<8x1xf32>
    %50 = vector.broadcast %49 : vector<8x1xf32> to vector<8x32xf32>
    %51 = arith.mulf %41, %50 : vector<8x32xf32>
    %52 = arith.mulf %18, %29 : vector<8x32xf32>
    %cst_22 = arith.constant dense<0.000000e+00> : vector<8xf32>
    %53 = vector.multi_reduction <add>, %52, %cst_22 [1] : vector<8x32xf32> to vector<8xf32>
    %54 = vector.shape_cast %53 : vector<8xf32> to vector<8x1xf32>
    %55 = arith.mulf %40, %51 : vector<8x32xf32>
    %cst_23 = arith.constant dense<0.000000e+00> : vector<8xf32>
    %56 = vector.multi_reduction <add>, %55, %cst_23 [1] : vector<8x32xf32> to vector<8xf32>
    %57 = vector.shape_cast %56 : vector<8xf32> to vector<1x8xf32>
    %58 = arith.truncf %18 : vector<8x32xf32> to vector<8x32xbf16>
    %59 = arith.truncf %51 : vector<8x32xf32> to vector<8x32xbf16>
    %cst_24 = arith.constant dense<0.000000e+00> : vector<8x8xf32>
    %60 = tpu.matmul %58, %59, %cst_24 {dimension_numbers = #tpu.dot_dimension_numbers<[1], [1], [0], [0], [0, 0, 1, 0], [], []>} : vector<8x32xbf16>, vector<8x32xbf16>, vector<8x8xf32> -> vector<8x8xf32>
    %c8_i32 = arith.constant 8 : i32
    %61 = arith.muli %arg0, %c8_i32 : i32
    %62 = tpu.iota {dimensions = array<i32: 0>} : vector<8x8xi32>
    %63 = vector.broadcast %61 : i32 to vector<8x8xi32>
    %64 = arith.addi %63, %62 : vector<8x8xi32>
    %c8_i32_25 = arith.constant 8 : i32
    %65 = arith.muli %arg1, %c8_i32_25 : i32
    %66 = tpu.iota {dimensions = array<i32: 1>} : vector<8x8xi32>
    %67 = vector.broadcast %65 : i32 to vector<8x8xi32>
    %68 = arith.addi %67, %66 : vector<8x8xi32>
    %69 = arith.cmpi ne, %64, %68 : vector<8x8xi32>
    %cst_26 = arith.constant 2.000000e-01 : f32
    %70 = vector.broadcast %cst_26 : f32 to vector<8x8xf32>
    %71 = arith.addf %70, %60 : vector<8x8xf32>
    %72 = vector.broadcast %57 : vector<1x8xf32> to vector<8x8xf32>
    %73 = arith.subf %71, %72 : vector<8x8xf32>
    %cst_27 = arith.constant 0.000000e+00 : f32
    %74 = vector.broadcast %cst_27 : f32 to vector<8x8xf32>
    %75 = arith.maximumf %73, %74 : vector<8x8xf32>
    %cst_28 = arith.constant 0.000000e+00 : f32
    %76 = vector.broadcast %cst_28 : f32 to vector<8x8xf32>
    %77 = arith.select %69, %75, %76 : vector<8x8xi1>, vector<8x8xf32>
    %cst_29 = arith.constant 2.000000e-01 : f32
    %78 = vector.broadcast %cst_29 : f32 to vector<8x8xf32>
    %79 = arith.addf %78, %60 : vector<8x8xf32>
    %80 = vector.broadcast %54 : vector<8x1xf32> to vector<8x8xf32>
    %81 = arith.subf %79, %80 : vector<8x8xf32>
    %cst_30 = arith.constant 0.000000e+00 : f32
    %82 = vector.broadcast %cst_30 : f32 to vector<8x8xf32>
    %83 = arith.maximumf %81, %82 : vector<8x8xf32>
    %cst_31 = arith.constant 0.000000e+00 : f32
    %84 = vector.broadcast %cst_31 : f32 to vector<8x8xf32>
    %85 = arith.select %69, %83, %84 : vector<8x8xi1>, vector<8x8xf32>
    %c0_32 = arith.constant 0 : index
    %c0_33 = arith.constant 0 : index
    %86 = vector.load %arg6[%c0_32, %c0_33] : memref<8x1xf32, #tpu.memory_space<vmem>>, vector<8x1xf32>
    %cst_34 = arith.constant dense<0xFF800000> : vector<8xf32>
    %87 = vector.multi_reduction <maximumf>, %77, %cst_34 [1] : vector<8x8xf32> to vector<8xf32>
    %88 = vector.shape_cast %87 : vector<8xf32> to vector<8x1xf32>
    %89 = arith.maximumf %86, %88 : vector<8x1xf32>
    %c0_35 = arith.constant 0 : index
    %c0_36 = arith.constant 0 : index
    %90 = vector.load %arg6[%c0_35, %c0_36] : memref<8x1xf32, #tpu.memory_space<vmem>>, vector<8x1xf32>
    tpu.vector_store %arg6[%c0_35, %c0_36], %89 {strides = array<i32>} : memref<8x1xf32, #tpu.memory_space<vmem>>, vector<8x1xf32>,
    %cst_37 = arith.constant dense<0xFF800000> : vector<8xf32>
    %91 = vector.multi_reduction <maximumf>, %85, %cst_37 [0] : vector<8x8xf32> to vector<8xf32>
    %92 = vector.shape_cast %91 : vector<8xf32> to vector<1x8xf32>
    %93 = tpu.iota {dimensions = array<i32: 0>} : vector<1x8xi32>
    %94 = vector.broadcast %arg1 : i32 to vector<1x8xi32>
    %95 = arith.cmpi eq, %93, %94 : vector<1x8xi32>
    %cst_38 = arith.constant 0.000000e+00 : f32
    %96 = vector.broadcast %cst_38 : f32 to vector<1x8xf32>
    %97 = arith.select %95, %92, %96 : vector<1x8xi1>, vector<1x8xf32>
    %c0_39 = arith.constant 0 : index
    %c0_40 = arith.constant 0 : index
    %98 = vector.load %arg7[%c0_39, %c0_40] : memref<1x8xf32, #tpu.memory_space<vmem>>, vector<1x8xf32>
    %99 = arith.maximumf %98, %97 : vector<1x8xf32>
    %c0_41 = arith.constant 0 : index
    %c0_42 = arith.constant 0 : index
    %100 = vector.load %arg7[%c0_41, %c0_42] : memref<1x8xf32, #tpu.memory_space<vmem>>, vector<1x8xf32>
    tpu.vector_store %arg7[%c0_41, %c0_42], %99 {strides = array<i32>} : memref<1x8xf32, #tpu.memory_space<vmem>>, vector<1x8xf32>,
    return
  }
  func.func @transform_0(%arg0: i32, %arg1: i32) -> (i32, i32) {
    %c0_i32 = arith.constant 0 : i32
    %c0_i32_0 = arith.constant 0 : i32
    return %arg0, %c0_i32 : i32, i32
  }
  func.func @transform_1(%arg0: i32, %arg1: i32) -> (i32, i32) {
    %c0_i32 = arith.constant 0 : i32
    %c0_i32_0 = arith.constant 0 : i32
    return %arg0, %c0_i32 : i32, i32
  }
  func.func @transform_2(%arg0: i32, %arg1: i32) -> (i32, i32) {
    %c0_i32 = arith.constant 0 : i32
    %c0_i32_0 = arith.constant 0 : i32
    return %arg1, %c0_i32 : i32, i32
  }
  func.func @transform_3(%arg0: i32, %arg1: i32) -> (i32, i32) {
    %c0_i32 = arith.constant 0 : i32
    %c0_i32_0 = arith.constant 0 : i32
    return %arg1, %c0_i32 : i32, i32
  }
  func.func @transform_4(%arg0: i32, %arg1: i32) -> (i32, i32) {
    %c0_i32 = arith.constant 0 : i32
    %c0_i32_0 = arith.constant 0 : i32
    return %arg0, %c0_i32 : i32, i32
  }
  func.func @transform_5(%arg0: i32, %arg1: i32) -> (i32, i32) {
    %c0_i32 = arith.constant 0 : i32
    %c0_i32_0 = arith.constant 0 : i32
    %c0_i32_1 = arith.constant 0 : i32
    return %c0_i32, %c0_i32_0 : i32, i32
  }
}

</mosaic_0001>

<llo_original>
// kernel: tpu_custom_call.1
$region0: #{tpu_custom_call.1}
  #allocation0 [shape = 'u32[]', space=smem, size = 0x4, offset = 0x4, fixed_abs, tag = 'smem constant byte address 0x4 - core index']
  #allocation1 [shape = 'u32[144,128]{1,0:T(1,128)}', space=vmem, size = 0x12000, scoped, tag = 'internal scratch']
  %s0 = inlined_call_operand.hbm [shape: f32[8,32], index: 0, kind: input, shape index: {}]
  %s1 = inlined_call_operand.hbm [shape: f32[8,32], index: 1, kind: input, shape index: {}]
  %s2 = inlined_call_operand.hbm [shape: f32[8,32], index: 2, kind: input, shape index: {}]
  %s3 = inlined_call_operand.hbm [shape: f32[8,32], index: 3, kind: input, shape index: {}]
  %s4 = inlined_call_operand.vmem [shape: f32[8,1], index: 4, kind: output, shape index: {0}]
  %s5 = inlined_call_operand.hbm [shape: f32[1,8], index: 5, kind: output, shape index: {1}]
  %6 = xla_tuple %s4, %s5
  %s7 = sld [smem:[#allocation0]]
  $region58: #{tpu_custom_call.1} parent=0
    _
  %s9 = ssub.s32 1, %s7
  %s10 = scalar_select 0, %s9, %s7
  $region1: #{tpu_custom_call.1} parent=0
    #allocation2 [shape = 'u8[4096]{0}', space=vmem, size = 0x1000, scoped, tag = 'input window, operand 0, single buffered']
    #allocation3 [shape = 's32[1]{0}', space=sflag, size = 0x4, scoped, tag = 'scoped memory for tpu_custom_call.1']
    #allocation4 [shape = 's32[1]{0}', space=sflag, size = 0x4, scoped, tag = 'scoped memory for tpu_custom_call.1']
    #allocation5 [shape = 'u8[4096]{0}', space=vmem, size = 0x1000, scoped, tag = 'input window, operand 1, single buffered']
    #allocation6 [shape = 's32[1]{0}', space=sflag, size = 0x4, scoped, tag = 'scoped memory for tpu_custom_call.1']
    #allocation7 [shape = 'u8[4096]{0}', space=vmem, size = 0x1000, scoped, tag = 'input window, operand 2, single buffered']
    #allocation8 [shape = 'u8[4096]{0}', space=vmem, size = 0x1000, scoped, tag = 'input window, operand 3, single buffered']
    #allocation9 [shape = 's32[1]{0}', space=sflag, size = 0x4, scoped, tag = 'scoped memory for tpu_custom_call.1']
    #allocation10 [shape = 'u8[512]{0}', space=vmem, size = 0x400, scoped, tag = 'output window, operand 1, single buffered']
    %11 = vsyncpa [#allocation3], 0
    %12 = vsyncpa [#allocation6], 0
    %13 = vsyncpa [#allocation9], 0
    %14 = vsyncpa [#allocation4], 0
    // Predicated region
    $region2: #{tpu_custom_call.1} parent=1 // pred_check
      _
    $region3: #{tpu_custom_call.1} parent=1 // pred_check_branch
      %16 = sbr.rel (0) target = $region5
    $region4: #{tpu_custom_call.1} parent=1 // pred_region
      %s18 = ssub.s32 128, 128
      %19 = vsyncadd [#allocation3], %s18
      %s21 = sshll.u32 [#allocation2], 4
      %s22 = int_to_ptr.vmem [resolvable:$true] %s21
      %24 = dma.hbm_to_vmem [thread:$0]  %s0, 128, %s22, [#allocation3]
    $region5: #{tpu_custom_call.1} parent=1 // pred_fallthru
      _
    // Predicated region
    $region6: #{tpu_custom_call.1} parent=1 // pred_check
      _
    $region7: #{tpu_custom_call.1} parent=1 // pred_check_branch
      %26 = sbr.rel (0) target = $region9
    $region8: #{tpu_custom_call.1} parent=1 // pred_region
      %s28 = ssub.s32 128, 128
      %29 = vsyncadd [#allocation6], %s28
      %s31 = sshll.u32 [#allocation5], 4
      %s32 = int_to_ptr.vmem [resolvable:$true] %s31
      %34 = dma.hbm_to_vmem [thread:$0]  %s1, 128, %s32, [#allocation6]
    $region9: #{tpu_custom_call.1} parent=1 // pred_fallthru
      _
    // Predicated region
    $region10: #{tpu_custom_call.1} parent=1 // pred_check
      _
    $region11: #{tpu_custom_call.1} parent=1 // pred_check_branch
      %36 = sbr.rel (0) target = $region13
    $region12: #{tpu_custom_call.1} parent=1 // pred_region
      %s38 = ssub.s32 128, 128
      %39 = vsyncadd [#allocation6], %s38
      %s41 = sshll.u32 [#allocation7], 4
      %s42 = int_to_ptr.vmem [resolvable:$true] %s41
      %44 = dma.hbm_to_vmem [thread:$0]  %s2, 128, %s42, [#allocation6]
    $region13: #{tpu_custom_call.1} parent=1 // pred_fallthru
      _
    // Predicated region
    $region14: #{tpu_custom_call.1} parent=1 // pred_check
      _
    $region15: #{tpu_custom_call.1} parent=1 // pred_check_branch
      %46 = sbr.rel (0) target = $region17
    $region16: #{tpu_custom_call.1} parent=1 // pred_region
      %s48 = ssub.s32 128, 128
      %49 = vsyncadd [#allocation9], %s48
      %s51 = sshll.u32 [#allocation8], 4
      %s52 = int_to_ptr.vmem [resolvable:$true] %s51
      %54 = dma.hbm_to_vmem [thread:$0]  %s3, 128, %s52, [#allocation9]
    $region17: #{tpu_custom_call.1} parent=1 // pred_fallthru
      _
    // Predicated region
    $region18: #{tpu_custom_call.1} parent=1 // pred_check
      _
    $region19: #{tpu_custom_call.1} parent=1 // pred_check_branch
      %56 = sbr.rel (0) target = $region21
    $region20: #{tpu_custom_call.1} parent=1 // pred_region
      %57 = dma.done [#allocation3], 128
    $region21: #{tpu_custom_call.1} parent=1 // pred_fallthru
      _
    // Predicated region
    $region22: #{tpu_custom_call.1} parent=1 // pred_check
      _
    $region23: #{tpu_custom_call.1} parent=1 // pred_check_branch
      %59 = sbr.rel (0) target = $region25
    $region24: #{tpu_custom_call.1} parent=1 // pred_region
      %60 = dma.done [#allocation6], 128
    $region25: #{tpu_custom_call.1} parent=1 // pred_fallthru
      _
    // Predicated region
    $region26: #{tpu_custom_call.1} parent=1 // pred_check
      _
    $region27: #{tpu_custom_call.1} parent=1 // pred_check_branch
      %62 = sbr.rel (0) target = $region29
    $region28: #{tpu_custom_call.1} parent=1 // pred_region
      %63 = dma.done [#allocation6], 128
    $region29: #{tpu_custom_call.1} parent=1 // pred_fallthru
      _
    // Predicated region
    $region30: #{tpu_custom_call.1} parent=1 // pred_check
      _
    $region31: #{tpu_custom_call.1} parent=1 // pred_check_branch
      %65 = sbr.rel (0) target = $region33
    $region32: #{tpu_custom_call.1} parent=1 // pred_region
      %66 = dma.done [#allocation9], 128
    $region33: #{tpu_custom_call.1} parent=1 // pred_fallthru
      _
    %p68 = scmp.eq.s32.totalorder 0, 0
    // Predicated region
    $region34: #{tpu_custom_call.1} parent=1 // pred_check
      %p69 = pneg %p68
    $region35: #{tpu_custom_call.1} parent=1 // pred_check_branch
      %71 = sbr.rel (%p69) target = $region37
    $region36: #{tpu_custom_call.1} parent=1 // pred_region
      %vm72 = vcmask 7168
      %73 = vst.msk [vmem:[%s4] sm:$0xff] %vm72, 0.0
    $region37: #{tpu_custom_call.1} parent=1 // pred_fallthru
      _
    %p74 = scmp.eq.s32.totalorder 0, 0
    %p75 = pnand %p74, %p68
    %p76 = pneg %p75
    // Predicated region
    $region38: #{tpu_custom_call.1} parent=1 // pred_check
      _
    $region39: #{tpu_custom_call.1} parent=1 // pred_check_branch
      %78 = sbr.rel (%p75) target = $region41
    $region40: #{tpu_custom_call.1} parent=1 // pred_region
      %vm79 = vcmask 57344
      %80 = vst.msk [vmem:[#allocation10] sm:$0x1] %vm79, 0.0
    $region41: #{tpu_custom_call.1} parent=1 // pred_fallthru
      _
    %v81 = vld [vmem:[#allocation2] sm:$0xff]
    %v82 = vmul.f32 %v81, %v81
    %vm83 = vcmask 261120
    %v84 = vsel %vm83, %v82, 0.0
    %85 = vadd.xlane.f32.xlu0 %v84
    %v86 = vpop.xlane.xlu0 %85
    %v87 = vrsqrt.pop %v86
    %v88 = vmul.f32 %v86, %v87
    %vm89 = vcmp.eq.f32.partialorder %v86, inf
    %v90 = vsel %vm89, %v86, %v88
    %vm91 = vcmp.eq.f32.partialorder %v86, 0.0
    %v92 = vand.u32 %v86, 2147483648
    %v93 = vsel %vm91, %v92, %v90
    %v94 = vadd.f32 %v93, 1e-06
    %v95 = vrcp.pop %v94
    %v96 = vmul.f32 1.0, %v95
    %v97 = vmul.f32 %v81, %v96
    %v98 = vld [vmem:[#allocation5] sm:$0xff]
    %v99 = vmul.f32 %v98, %v98
    %v100 = vsel %vm83, %v99, 0.0
    %101 = vadd.xlane.f32.xlu0 %v100
    %v102 = vpop.xlane.xlu0 %101
    %v103 = vrsqrt.pop %v102
    %v104 = vmul.f32 %v102, %v103
    %vm105 = vcmp.eq.f32.partialorder %v102, inf
    %v106 = vsel %vm105, %v102, %v104
    %vm107 = vcmp.eq.f32.partialorder %v102, 0.0
    %v108 = vand.u32 %v102, 2147483648
    %v109 = vsel %vm107, %v108, %v106
    %v110 = vadd.f32 %v109, 1e-06
    %v111 = vrcp.pop %v110
    %v112 = vmul.f32 1.0, %v111
    %v113 = vmul.f32 %v98, %v112
    %v114 = vld [vmem:[#allocation7] sm:$0xff]
    %v115 = vmul.f32 %v114, %v114
    %v116 = vsel %vm83, %v115, 0.0
    %117 = vadd.xlane.f32.xlu0 %v116
    %v118 = vpop.xlane.xlu0 %117
    %v119 = vrsqrt.pop %v118
    %v120 = vmul.f32 %v118, %v119
    %vm121 = vcmp.eq.f32.partialorder %v118, inf
    %v122 = vsel %vm121, %v118, %v120
    %vm123 = vcmp.eq.f32.partialorder %v118, 0.0
    %v124 = vand.u32 %v118, 2147483648
    %v125 = vsel %vm123, %v124, %v122
    %v126 = vadd.f32 %v125, 1e-06
    %v127 = vrcp.pop %v126
    %v128 = vmul.f32 1.0, %v127
    %v129 = vmul.f32 %v114, %v128
    %v130 = vld [vmem:[#allocation8] sm:$0xff]
    %v131 = vmul.f32 %v130, %v130
    %v132 = vsel %vm83, %v131, 0.0
    %133 = vadd.xlane.f32.xlu0 %v132
    %v134 = vpop.xlane.xlu0 %133
    %v135 = vrsqrt.pop %v134
    %v136 = vmul.f32 %v134, %v135
    %vm137 = vcmp.eq.f32.partialorder %v134, inf
    %v138 = vsel %vm137, %v134, %v136
    %vm139 = vcmp.eq.f32.partialorder %v134, 0.0
    %v140 = vand.u32 %v134, 2147483648
    %v141 = vsel %vm139, %v140, %v138
    %v142 = vadd.f32 %v141, 1e-06
    %v143 = vrcp.pop %v142
    %v144 = vmul.f32 1.0, %v143
    %v145 = vmul.f32 %v130, %v144
    %v146 = vmul.f32 %v97, %v113
    %v147 = vsel %vm83, %v146, 0.0
    %148 = vadd.xlane.f32.xlu0 %v147
    %v149 = vpop.xlane.xlu0 %148
    %v150 = vmul.f32 %v129, %v145
    %v151 = vsel %vm83, %v150, 0.0
    %152 = vadd.xlane.f32.xlu0 %v151
    %v153 = vpop.xlane.xlu0 %152
    %v154 = vpack.c.bf16 %v97, %v97
    %v155 = vpack.c.bf16 %v145, %v145
    %s156 = smul.u32 0, 8
    %v157 = vlaneseq
    %v158 = vshrl.u32 %v157, 7
    %v159 = vstv %s156
    %v160 = vadd.s32 %v159, %v158
    %s161 = smul.u32 0, 8
    %v162 = vlaneseq
    %v163 = vand.u32 %v162, 127
    %v164 = vstv %s161
    %v165 = vadd.s32 %v164, %v163
    %vm166 = vcmp.ne.s32.totalorder %v160, %v165
    %v168 = vsel %vm83, %v154, 0
    %v171 = vsel %vm83, %v155, 0
    %173 = vmatprep.subr.bf16.mxu0 0
    %174 = vmatpush1.bf16.xpose.msra.mxu0 0
    %175 = vmatprep.subr.bf16.mxu0 0
    %176 = vmatpush1.bf16.xpose.msra.mxu0 0
    %177 = vmatprep.subr.bf16.mxu0 0
    %178 = vmatpush1.bf16.xpose.msra.mxu0 0
    %179 = vmatprep.subr.bf16.mxu0 0
    %180 = vmatpush1.bf16.xpose.msra.mxu0 0
    %181 = vmatprep.subr.bf16.mxu0 0
    %182 = vmatpush1.bf16.xpose.msra.mxu0 0
    %183 = vmatprep.subr.bf16.mxu0 0
    %184 = vmatpush1.bf16.xpose.msra.mxu0 0
    %185 = vmatprep.subr.bf16.mxu0 0
    %186 = vmatpush1.bf16.xpose.msra.mxu0 0
    %187 = vmatprep.subr.bf16.mxu0 0
    %188 = vmatpush1.bf16.xpose.msra.mxu0 %v171
    %189 = vmatprep.subr.bf16.mxu0 0
    %190 = vmatpush2.bf16.xpose.msra.mxu0 0
    %191 = vmatprep.subr.bf16.mxu0 0
    %192 = vmatpush2.bf16.xpose.msra.mxu0 0
    %193 = vmatprep.subr.bf16.mxu0 0
    %194 = vmatpush2.bf16.xpose.msra.mxu0 0
    %195 = vmatprep.subr.bf16.mxu0 0
    %196 = vmatpush2.bf16.xpose.msra.mxu0 0
    %197 = vmatprep.subr.bf16.mxu0 0
    %198 = vmatpush2.bf16.xpose.msra.mxu0 0
    %199 = vmatprep.subr.bf16.mxu0 0
    %200 = vmatpush2.bf16.xpose.msra.mxu0 0
    %201 = vmatprep.subr.bf16.mxu0 0
    %202 = vmatpush2.bf16.xpose.msra.mxu0 0
    %203 = vmatprep.subr.bf16.mxu0 0
    %204 = vmatpush2.bf16.xpose.msra.mxu0 0
    %205 = vmatprep.mubr.bf16.mxu0 0
    %206 = vmatmul.mubr.bf16.gmra.mxu0 %v168
    %v207 = vpop.f32.mrf.mxu0
    %v208 = vadd.f32 0.2, %v207
    %v209 = vpop.f32.mrf.mxu0
    %v210 = vpop.f32.mrf.mxu0
    %v211 = vpop.f32.mrf.mxu0
    %212 = vdwg.mxu0
    %v214 = vlaneseq
    %v215 = vshrl.u32 %v214, 7
    %v216 = vsub.s32 %v163, %v215
    %v217 = vrot.slane %v153, %v216
    %vm218 = vcmask 1042434
    %v219 = vsel %vm218, %v217, %v217
    %vm220 = vcmask 1043459
    %v221 = vsel %vm220, %v217, %v219
    %vm222 = vcmask 1044484
    %v223 = vsel %vm222, %v217, %v221
    %vm224 = vcmask 1045509
    %v225 = vsel %vm224, %v217, %v223
    %vm226 = vcmask 1046534
    %v227 = vsel %vm226, %v217, %v225
    %vm228 = vcmask 1047559
    %v229 = vsel %vm228, %v217, %v227
    %v231 = vsub.f32 %v208, %v229
    %v232 = vmax.f32 %v231, 0.0
    %v233 = vsel %vm166, %v232, 0.0
    %v234 = vsub.f32 %v208, %v149
    %v235 = vmax.f32 %v234, 0.0
    %v236 = vsel %vm166, %v235, 0.0
    %v237 = vld [vmem:[%s4] sm:$0xff]
    %vm238 = vcmask 64512
    %v239 = vsel %vm238, %v233, -inf
    %240 = vmax.xlane.f32.xlu0 %v239
    %v241 = vpop.xlane.xlu0 %240
    %v242 = vmax.f32 %v237, %v241
    %vm243 = vcmask 7168
    %244 = vst.msk [vmem:[%s4] sm:$0xff] %vm243, %v242
    %v245 = vsel %vm238, %v236, -inf
    %v246 = vrot.slane %v245, 4
    %v247 = vmax.f32 %v245, %v246
    %v248 = vrot.slane %v247, 2
    %v249 = vmax.f32 %v247, %v248
    %v250 = vrot.slane %v249, 1
    %v251 = vmax.f32 %v249, %v250
    %v252 = vstv 0
    %vm253 = vcmp.eq.s32.totalorder %v158, %v252
    %v254 = vsel %vm253, %v251, 0.0
    %v255 = vld [vmem:[#allocation10] sm:$0x1]
    %v256 = vmax.f32 %v255, %v254
    %vm257 = vcmask 57344
    %258 = vst.msk [vmem:[#allocation10] sm:$0x1] %vm257, %v256
    // Predicated region
    $region42: #{tpu_custom_call.1} parent=1 // pred_check
      _
    $region43: #{tpu_custom_call.1} parent=1 // pred_check_branch
      %260 = sbr.rel (0) target = $region45
    $region44: #{tpu_custom_call.1} parent=1 // pred_region
      _
    $region45: #{tpu_custom_call.1} parent=1 // pred_fallthru
      _
    // Predicated region
    $region46: #{tpu_custom_call.1} parent=1 // pred_check
      _
    $region47: #{tpu_custom_call.1} parent=1 // pred_check_branch
      %262 = sbr.rel (0) target = $region49
    $region48: #{tpu_custom_call.1} parent=1 // pred_region
      %s264 = ssub.s32 16, 16
      %265 = vsyncadd [#allocation4], %s264
      %s267 = sshll.u32 [#allocation10], 4
      %s268 = int_to_ptr.vmem [resolvable:$true] %s267
      %270 = dma.vmem_to_hbm [thread:$0]  %s268, 16, %s5, [#allocation4]
    $region49: #{tpu_custom_call.1} parent=1 // pred_fallthru
      _
    // Predicated region
    $region50: #{tpu_custom_call.1} parent=1 // pred_check
      _
    $region51: #{tpu_custom_call.1} parent=1 // pred_check_branch
      %272 = sbr.rel (0) target = $region53
    $region52: #{tpu_custom_call.1} parent=1 // pred_region
      _
    $region53: #{tpu_custom_call.1} parent=1 // pred_fallthru
      _
    // Predicated region
    $region54: #{tpu_custom_call.1} parent=1 // pred_check
      _
    $region55: #{tpu_custom_call.1} parent=1 // pred_check_branch
      %274 = sbr.rel (0) target = $region57
    $region56: #{tpu_custom_call.1} parent=1 // pred_region
      %275 = dma.done [#allocation4], 16
    $region57: #{tpu_custom_call.1} parent=1 // pred_fallthru
      _
    %276 = vsyncpa [#allocation3], 1
    %277 = vsyncpa [#allocation6], 1
    %278 = vsyncpa [#allocation9], 1
    %279 = vsyncpa [#allocation4], 1

</llo_original>
